<compile_context>
chip_gen: v6e
topology: v6e:2x2x1
jax: 0.10.0
libtpu: 0.0.40
codegen_flags: <defaults>
</compile_context>

<pallas_src>
import jax
import jax.numpy as jnp
from jax.experimental import pallas as pl
from jax.experimental.pallas import tpu as pltpu


def _round_up(x: int, m: int) -> int:
    return ((x + m - 1) // m) * m


def _make_mlp_kernel(num_layers: int):
    """Fused MLP kernel on a (C_in, tile_p) lane-dense slab."""

    def kernel(*refs):
        # refs = (x_ref, w1, b1, w2, b2, ..., wL, bL, o_ref)
        x_ref = refs[0]
        o_ref = refs[-1]
        param_refs = refs[1:-1]

        # bf16 operands for the MXU; accumulation and element-wise work stay in f32.
        h = x_ref[...].astype(jnp.bfloat16)                  # (C_in, tile_p)
        for i in range(num_layers):
            w = param_refs[2 * i][...]                       # (out_i, in_i)  bf16
            b = param_refs[2 * i + 1][...]                   # (out_i, 1)     f32
            acc = jnp.dot(w, h, preferred_element_type=jnp.float32) + b
            if i < num_layers - 1:
                h = jnp.maximum(acc, 0.0).astype(jnp.bfloat16)   # ReLU (f32) -> bf16 operand
            else:
                o_ref[...] = acc.astype(o_ref.dtype)         # lane-dense store

    return kernel


def conv_mlp_pallas(x_ncp, weights, biases, *, tile_p: int):
    """Apply the ConvMLP to x of shape (N, C_in, P).

    weights[i]: (out_i, in_i) bf16   (PyTorch orientation, no transpose needed)
    biases[i] : (out_i, 1)    f32
    """
    num_layers = len(weights)
    N, C, P = x_ncp.shape
    out_dim = weights[-1].shape[0]

    # Edge block (when P % tile_p != 0) is clipped on load and masked on store by
    # Pallas; all ops are column-local so the out-of-bounds lanes never matter.
    grid = (N, pl.cdiv(P, tile_p))

    in_specs = [pl.BlockSpec((pl.Squeezed(), C, tile_p), lambda n, p: (n, 0, p))]
    flat_params = []
    for w, b in zip(weights, biases):
        # Constant index_map -> never re-fetched; single buffer frees VMEM.
        in_specs.append(pl.BlockSpec(w.shape, lambda n, p: (0, 0),
                                     pipeline_mode=pl.Buffered(1)))
        in_specs.append(pl.BlockSpec(b.shape, lambda n, p: (0, 0),
                                     pipeline_mode=pl.Buffered(1)))
        flat_params.extend([w, b])
    out_spec = pl.BlockSpec((pl.Squeezed(), out_dim, tile_p), lambda n, p: (n, 0, p))

    # VMEM budget: double-buffered f32 in/out slabs + single-buffered params +
    # generous room for f32 intermediates; clamp into [32 MiB, 48 MiB] so it stays
    # under v7x's 64 MiB physical VMEM and above v5e's 16 MiB scoped default.
    max_dim = max(max(w.shape) for w in weights)
    param_bytes = sum(w.size * w.dtype.itemsize + b.size * b.dtype.itemsize
                      for w, b in zip(weights, biases))
    io_bytes = 2 * 2 * tile_p * 4 * (C + out_dim)
    interm_bytes = 4 * tile_p * 4 * max_dim
    budget = io_bytes + param_bytes + interm_bytes + (8 << 20)
    vmem_limit = int(min(max(budget, 32 << 20), 48 << 20))

    flops = 2 * N * P * sum(w.shape[0] * w.shape[1] for w in weights)
    bytes_accessed = 4 * N * P * (C + out_dim) + param_bytes

    return pl.pallas_call(
        _make_mlp_kernel(num_layers),
        out_shape=jax.ShapeDtypeStruct((N, out_dim, P), x_ncp.dtype),
        grid_spec=pltpu.PrefetchScalarGridSpec(
            num_scalar_prefetch=0,
            grid=grid,
            in_specs=in_specs,
            out_specs=out_spec,
        ),
        compiler_params=pltpu.CompilerParams(
            # Both axes independent -> megacore sharding on v7x.
            dimension_semantics=("parallel", "parallel"),
            vmem_limit_bytes=vmem_limit,
        ),
        cost_estimate=pl.CostEstimate(
            flops=flops, transcendentals=0, bytes_accessed=bytes_accessed),
    )(x_ncp, *flat_params)


def conv_mlp_forward(x_nchw, weights, biases, *, tile_p: int = 4096):
    """Full forward matching ConvMLP with affine_func = 1x1 Conv2d, input NCHW (f32 I/O)."""
    N, C, H, W = x_nchw.shape
    P = H * W
    out_dim = weights[-1].shape[0]

    # Contiguous flatten of the spatial dims only — no data movement / transpose.
    x_ncp = x_nchw.reshape(N, C, P)

    # Lane tile: multiple of 128, clamped so small spatial extents still work.
    tp = min(tile_p, _round_up(P, 128))
    # v7x has 2 TensorCores; if the batch axis alone can't give >= 2 parallel grid
    # steps, split the spatial axis so both cores are used.
    if N == 1 and P > 128:
        tp = min(tp, max(128, _round_up((P + 1) // 2, 128)))

    # Cast weights once to bf16 (MXU-native operand dtype); biases stay f32.
    w_bf16 = [w.astype(jnp.bfloat16) for w in weights]

    y = conv_mlp_pallas(x_ncp, w_bf16, biases, tile_p=tp)
    return y.reshape(N, out_dim, H, W)


def init_params(key, input_dim, hidden_dim, output_dim, num_layers):
    """Deterministic parameter init matching the module's layer shapes."""
    h = [hidden_dim] * (num_layers - 1)
    in_dims = [input_dim] + h
    out_dims = h + [output_dim]
    weights, biases = [], []
    for n_in, n_out in zip(in_dims, out_dims):
        key, kw, kb = jax.random.split(key, 3)
        w = jax.random.normal(kw, (n_out, n_in), dtype=jnp.float32) * 0.05  # PyTorch (out, in)
        b = jax.random.normal(kb, (n_out, 1), dtype=jnp.float32) * 0.05
        weights.append(w)
        biases.append(b)
    return weights, biases


def reference_forward(x_nchw, weights, biases):
    """Plain-JAX f32 reference of the same forward pass (for correctness check)."""
    N, C, H, W = x_nchw.shape
    h = x_nchw.reshape(N, C, H * W)
    L = len(weights)
    for i, (w, b) in enumerate(zip(weights, biases)):
        h = jnp.einsum("oc,ncp->nop", w, h,
                       precision=jax.lax.Precision.HIGHEST) + b[None, :, :]
        if i < L - 1:
            h = jnp.maximum(h, 0.0)
    return h.reshape(N, weights[-1].shape[0], H, W)


if __name__ == "__main__":
    # Small shapes consistent with the module (1x1-conv MLP over channels).
    N, C, H, W = 2, 4, 16, 16          # input NCHW
    input_dim, hidden_dim, output_dim, num_layers = C, 32, 4, 3

    key = jax.random.PRNGKey(0)
    key, kx = jax.random.split(key)
    x = jax.random.normal(kx, (N, C, H, W), dtype=jnp.float32)

    weights, biases = init_params(key, input_dim, hidden_dim, output_dim, num_layers)

    y = conv_mlp_forward(x, weights, biases)
    y = jax.block_until_ready(y)

    y_ref = reference_forward(x, weights, biases)
    assert y.shape == (N, output_dim, H, W)
    # Kernel uses bf16 matmul operands (f32 accumulation); tolerance widened accordingly.
    assert jnp.allclose(y, y_ref, atol=1e-2, rtol=5e-2), "mismatch vs reference"

    print("KERNEL_OK")
</pallas_src>

<mosaic_0001>
module attributes {stable_mosaic.version = 11 : i64} {
  func.func @kernel(%arg0: i32, %arg1: i32, %arg2: memref<1x4x256xf32, #tpu.memory_space<vmem>>, %arg3: memref<32x4xbf16, #tpu.memory_space<vmem>>, %arg4: memref<32x1xf32, #tpu.memory_space<vmem>>, %arg5: memref<32x32xbf16, #tpu.memory_space<vmem>>, %arg6: memref<32x1xf32, #tpu.memory_space<vmem>>, %arg7: memref<4x32xbf16, #tpu.memory_space<vmem>>, %arg8: memref<4x1xf32, #tpu.memory_space<vmem>>, %arg9: memref<1x4x256xf32, #tpu.memory_space<vmem>>) attributes {dimension_semantics = [#tpu.dimension_semantics<parallel>, #tpu.dimension_semantics<parallel>], iteration_bounds = array<i64: 2, 1>, scalar_prefetch = 0 : i64, scratch_operands = 0 : i64, tpu.core_type = #tpu.core_type<tc>, window_params = [{transform_indices = @transform_0, window_bounds = array<i64: 1, 4, 256>}, {pipeline_mode = #tpu.pipeline_mode<synchronous>, transform_indices = @transform_1, window_bounds = array<i64: 32, 4>}, {pipeline_mode = #tpu.pipeline_mode<synchronous>, transform_indices = @transform_2, window_bounds = array<i64: 32, 1>}, {pipeline_mode = #tpu.pipeline_mode<synchronous>, transform_indices = @transform_3, window_bounds = array<i64: 32, 32>}, {pipeline_mode = #tpu.pipeline_mode<synchronous>, transform_indices = @transform_4, window_bounds = array<i64: 32, 1>}, {pipeline_mode = #tpu.pipeline_mode<synchronous>, transform_indices = @transform_5, window_bounds = array<i64: 4, 32>}, {pipeline_mode = #tpu.pipeline_mode<synchronous>, transform_indices = @transform_6, window_bounds = array<i64: 4, 1>}, {transform_indices = @transform_7, window_bounds = array<i64: 1, 4, 256>}]} {
    %c0 = arith.constant 0 : index
    %c0_0 = arith.constant 0 : index
    %c0_1 = arith.constant 0 : index
    %0 = vector.load %arg2[%c0, %c0_0, %c0_1] : memref<1x4x256xf32, #tpu.memory_space<vmem>>, vector<1x4x256xf32>
    %1 = vector.shape_cast %0 : vector<1x4x256xf32> to vector<4x256xf32>
    %2 = arith.truncf %1 : vector<4x256xf32> to vector<4x256xbf16>
    %c0_2 = arith.constant 0 : index
    %c0_3 = arith.constant 0 : index
    %3 = vector.load %arg3[%c0_2, %c0_3] : memref<32x4xbf16, #tpu.memory_space<vmem>>, vector<32x4xbf16>
    %c0_4 = arith.constant 0 : index
    %c0_5 = arith.constant 0 : index
    %4 = vector.load %arg4[%c0_4, %c0_5] : memref<32x1xf32, #tpu.memory_space<vmem>>, vector<32x1xf32>
    %cst = arith.constant dense<0.000000e+00> : vector<32x256xf32>
    %5 = tpu.matmul %3, %2, %cst {dimension_numbers = #tpu.dot_dimension_numbers<[1], [0], [0], [1], [0, 0, 1, 1], [], []>} : vector<32x4xbf16>, vector<4x256xbf16>, vector<32x256xf32> -> vector<32x256xf32>
    %6 = vector.broadcast %4 : vector<32x1xf32> to vector<32x256xf32>
    %7 = arith.addf %5, %6 : vector<32x256xf32>
    %cst_6 = arith.constant 0.000000e+00 : f32
    %8 = vector.broadcast %cst_6 : f32 to vector<32x256xf32>
    %9 = arith.maximumf %7, %8 : vector<32x256xf32>
    %10 = arith.truncf %9 : vector<32x256xf32> to vector<32x256xbf16>
    %c0_7 = arith.constant 0 : index
    %c0_8 = arith.constant 0 : index
    %11 = vector.load %arg5[%c0_7, %c0_8] : memref<32x32xbf16, #tpu.memory_space<vmem>>, vector<32x32xbf16>
    %c0_9 = arith.constant 0 : index
    %c0_10 = arith.constant 0 : index
    %12 = vector.load %arg6[%c0_9, %c0_10] : memref<32x1xf32, #tpu.memory_space<vmem>>, vector<32x1xf32>
    %cst_11 = arith.constant dense<0.000000e+00> : vector<32x256xf32>
    %13 = tpu.matmul %11, %10, %cst_11 {dimension_numbers = #tpu.dot_dimension_numbers<[1], [0], [0], [1], [0, 0, 1, 1], [], []>} : vector<32x32xbf16>, vector<32x256xbf16>, vector<32x256xf32> -> vector<32x256xf32>
    %14 = vector.broadcast %12 : vector<32x1xf32> to vector<32x256xf32>
    %15 = arith.addf %13, %14 : vector<32x256xf32>
    %cst_12 = arith.constant 0.000000e+00 : f32
    %16 = vector.broadcast %cst_12 : f32 to vector<32x256xf32>
    %17 = arith.maximumf %15, %16 : vector<32x256xf32>
    %18 = arith.truncf %17 : vector<32x256xf32> to vector<32x256xbf16>
    %c0_13 = arith.constant 0 : index
    %c0_14 = arith.constant 0 : index
    %19 = vector.load %arg7[%c0_13, %c0_14] : memref<4x32xbf16, #tpu.memory_space<vmem>>, vector<4x32xbf16>
    %c0_15 = arith.constant 0 : index
    %c0_16 = arith.constant 0 : index
    %20 = vector.load %arg8[%c0_15, %c0_16] : memref<4x1xf32, #tpu.memory_space<vmem>>, vector<4x1xf32>
    %cst_17 = arith.constant dense<0.000000e+00> : vector<4x256xf32>
    %21 = tpu.matmul %19, %18, %cst_17 {dimension_numbers = #tpu.dot_dimension_numbers<[1], [0], [0], [1], [0, 0, 1, 1], [], []>} : vector<4x32xbf16>, vector<32x256xbf16>, vector<4x256xf32> -> vector<4x256xf32>
    %22 = vector.broadcast %20 : vector<4x1xf32> to vector<4x256xf32>
    %23 = arith.addf %21, %22 : vector<4x256xf32>
    %c0_18 = arith.constant 0 : index
    %c0_19 = arith.constant 0 : index
    %c0_20 = arith.constant 0 : index
    %24 = vector.load %arg9[%c0_18, %c0_19, %c0_20] : memref<1x4x256xf32, #tpu.memory_space<vmem>>, vector<1x4x256xf32>
    %25 = vector.shape_cast %24 : vector<1x4x256xf32> to vector<4x256xf32>
    %26 = vector.shape_cast %23 : vector<4x256xf32> to vector<1x4x256xf32>
    tpu.vector_store %arg9[%c0_18, %c0_19, %c0_20], %26 {strides = array<i32>} : memref<1x4x256xf32, #tpu.memory_space<vmem>>, vector<1x4x256xf32>,
    return
  }
  func.func @transform_0(%arg0: i32, %arg1: i32) -> (i32, i32, i32) {
    %c0_i32 = arith.constant 0 : i32
    %c0_i32_0 = arith.constant 0 : i32
    return %arg0, %c0_i32, %arg1 : i32, i32, i32
  }
  func.func @transform_1(%arg0: i32, %arg1: i32) -> (i32, i32) {
    %c0_i32 = arith.constant 0 : i32
    %c0_i32_0 = arith.constant 0 : i32
    %c0_i32_1 = arith.constant 0 : i32
    return %c0_i32, %c0_i32_0 : i32, i32
  }
  func.func @transform_2(%arg0: i32, %arg1: i32) -> (i32, i32) {
    %c0_i32 = arith.constant 0 : i32
    %c0_i32_0 = arith.constant 0 : i32
    %c0_i32_1 = arith.constant 0 : i32
    return %c0_i32, %c0_i32_0 : i32, i32
  }
  func.func @transform_3(%arg0: i32, %arg1: i32) -> (i32, i32) {
    %c0_i32 = arith.constant 0 : i32
    %c0_i32_0 = arith.constant 0 : i32
    %c0_i32_1 = arith.constant 0 : i32
    return %c0_i32, %c0_i32_0 : i32, i32
  }
  func.func @transform_4(%arg0: i32, %arg1: i32) -> (i32, i32) {
    %c0_i32 = arith.constant 0 : i32
    %c0_i32_0 = arith.constant 0 : i32
    %c0_i32_1 = arith.constant 0 : i32
    return %c0_i32, %c0_i32_0 : i32, i32
  }
  func.func @transform_5(%arg0: i32, %arg1: i32) -> (i32, i32) {
    %c0_i32 = arith.constant 0 : i32
    %c0_i32_0 = arith.constant 0 : i32
    %c0_i32_1 = arith.constant 0 : i32
    return %c0_i32, %c0_i32_0 : i32, i32
  }
  func.func @transform_6(%arg0: i32, %arg1: i32) -> (i32, i32) {
    %c0_i32 = arith.constant 0 : i32
    %c0_i32_0 = arith.constant 0 : i32
    %c0_i32_1 = arith.constant 0 : i32
    return %c0_i32, %c0_i32_0 : i32, i32
  }
  func.func @transform_7(%arg0: i32, %arg1: i32) -> (i32, i32, i32) {
    %c0_i32 = arith.constant 0 : i32
    %c0_i32_0 = arith.constant 0 : i32
    return %arg0, %c0_i32, %arg1 : i32, i32, i32
  }
}

</mosaic_0001>

<llo_original>
// kernel: tpu_custom_call.1
$region0: #{tpu_custom_call.1}
  #allocation0 [shape = 'u32[]', space=smem, size = 0x4, offset = 0x4, fixed_abs, tag = 'smem constant byte address 0x4 - core index']
  #allocation1 [shape = 'u32[144,128]{1,0:T(1,128)}', space=vmem, size = 0x12000, scoped, tag = 'internal scratch']
  %s0 = inlined_call_operand.vmem [shape: f32[2,4,256], index: 0, kind: input, shape index: {}]
  %s1 = inlined_call_operand.vmem [shape: bf16[32,4], index: 1, kind: input, shape index: {}]
  %s2 = inlined_call_operand.vmem [shape: f32[32,1], index: 2, kind: input, shape index: {}]
  %s3 = inlined_call_operand.vmem [shape: bf16[32,32], index: 3, kind: input, shape index: {}]
  %s4 = inlined_call_operand.vmem [shape: f32[32,1], index: 4, kind: input, shape index: {}]
  %s5 = inlined_call_operand.vmem [shape: bf16[4,32], index: 5, kind: input, shape index: {}]
  %s6 = inlined_call_operand.vmem [shape: f32[4,1], index: 6, kind: input, shape index: {}]
  %s7 = inlined_call_operand.hbm [shape: f32[2,4,256], index: 7, kind: output, shape index: {}]
  %s8 = sld [smem:[#allocation0]]
  $region61: #{tpu_custom_call.1} parent=0
    _
  %s10 = ssub.s32 1, %s8
  %s11 = scalar_select 0, %s10, %s8
  $region1: #{tpu_custom_call.1} parent=0
    #allocation2 [shape = 'u8[8192]{0}', space=vmem, size = 0x2000, scoped, tag = 'output window, operand 0']
    #allocation3 [shape = 's32[2]{0}', space=sflag, size = 0x8, scoped, tag = 'scoped memory for tpu_custom_call.1']
    %12 = vsyncpa [#allocation3], 0
    %s13 = scalar_lea.sflag [#allocation3], 1
    %14 = vsyncpa %s13, 0
    loop: start=0, step=1, limit=4
    $region2: #{tpu_custom_call.1} parent=1 // loop_pre_header
      _
    $region3: #{tpu_custom_call.1} parent=1 // loop_header
      %s16 = sphi 0, %s20
      %p17 = scmp.ge.s32.totalorder %s16, 4
      %s23 = sphi 0, %s35
      %s24 = sphi 0, %s31
      %s25 = sphi 0, %s23
      %s26 = sphi 0, %s24
      %s27 = sphi 0, %s25
      %s28 = sphi 0, %s26
      %s40 = sphi 0, %s42
      %s43 = sphi 0, %s40
      %s44 = sphi 0, %s43
      %s60 = sphi 0, %s44
      %s64 = sphi 0, %s64
      %s66 = sphi 0, %s64
      %s67 = sphi 0, %s66
      %s81 = sphi 0, %s67
      %s85 = sphi 0, %s85
      %s87 = sphi 0, %s85
      %s88 = sphi 0, %s87
      %s102 = sphi 0, %s88
      %s106 = sphi 0, %s106
      %s108 = sphi 0, %s106
      %s109 = sphi 0, %s108
      %s123 = sphi 0, %s109
      %s127 = sphi 0, %s127
      %s129 = sphi 0, %s127
      %s130 = sphi 0, %s129
      %s144 = sphi 0, %s130
      %s148 = sphi 0, %s148
      %s150 = sphi 0, %s148
      %s151 = sphi 0, %s150
      %s165 = sphi 0, %s151
      %s169 = sphi 0, %s169
      %s171 = sphi 0, %s169
      %s172 = sphi 0, %s171
      %s186 = sphi 0, %s172
      %s194 = sphi 0, %s196
      %s197 = sphi 0, %s194
      %s198 = sphi 0, %s197
      %s214 = sphi 0, %s198
    $region4: #{tpu_custom_call.1} parent=1 // loop_header_branch
      %19 = sbr.rel (%p17) target = $region8
    $region5: #{tpu_custom_call.1} parent=1 // loop_body
      %s21 = ssub.s32 %s16, 1
      %s22 = ssub.s32 %s16, 2
      %s29 = sadd.s32 1, %s24
      %p30 = scmp.ge.s32.totalorder %s29, 1
      %s31 = scalar_select %p30, 0, %s29
      %s32 = sadd.s32 1, %s23
      %s33 = scalar_select %p30, %s32, %s23
      %p34 = scmp.ge.s32.totalorder %s33, 2
      %s35 = scalar_select %p34, 0, %s33
      %s36 = ssub.s32 %s23, %s35
      %s37 = ssub.s32 %s24, %s31
      %s38 = sor.u32 %s36, %s37
      %p39 = scmp.eq.s32.totalorder %s38, 0
      %s41 = sadd.s32 %s40, 1
      %s42 = scalar_select %p39, %s40, %s41
      %p45 = pneg %p39
      %p46 = scmp.eq.s32.totalorder %s16, 1
      %p47 = por %p45, %p46
      %p48 = scmp.ne.s32.totalorder %s40, %s43
      %p49 = scmp.eq.s32.totalorder %s16, 0
      %p50 = por %p48, %p49
      %p51 = scmp.ne.s32.totalorder %s40, %s43
      %p52 = scmp.eq.s32.totalorder %s21, 1
      %p53 = por %p51, %p52
      %p54 = scmp.ne.s32.totalorder %s43, %s44
      %p55 = scmp.eq.s32.totalorder %s21, 0
      %p56 = por %p54, %p55
      %p57 = scmp.ne.s32.totalorder %s43, %s44
      %p58 = scmp.eq.s32.totalorder %s22, 1
      %p59 = por %p57, %p58
      %p61 = scmp.ne.s32.totalorder %s44, %s60
      %p62 = scmp.eq.s32.totalorder %s22, 0
      %p63 = por %p61, %p62
      %s65 = sadd.s32 %s64, 1
      %p68 = scmp.eq.s32.totalorder %s16, 1
      %p69 = scmp.ne.s32.totalorder %s64, %s66
      %p70 = scmp.eq.s32.totalorder %s16, 0
      %p71 = por %p69, %p70
      %p72 = scmp.ne.s32.totalorder %s64, %s66
      %p73 = scmp.eq.s32.totalorder %s21, 1
      %p74 = por %p72, %p73
      %p75 = scmp.ne.s32.totalorder %s66, %s67
      %p76 = scmp.eq.s32.totalorder %s21, 0
      %p77 = por %p75, %p76
      %p78 = scmp.ne.s32.totalorder %s66, %s67
      %p79 = scmp.eq.s32.totalorder %s22, 1
      %p80 = por %p78, %p79
      %p82 = scmp.ne.s32.totalorder %s67, %s81
      %p83 = scmp.eq.s32.totalorder %s22, 0
      %p84 = por %p82, %p83
      %s86 = sadd.s32 %s85, 1
      %p89 = scmp.eq.s32.totalorder %s16, 1
      %p90 = scmp.ne.s32.totalorder %s85, %s87
      %p91 = scmp.eq.s32.totalorder %s16, 0
      %p92 = por %p90, %p91
      %p93 = scmp.ne.s32.totalorder %s85, %s87
      %p94 = scmp.eq.s32.totalorder %s21, 1
      %p95 = por %p93, %p94
      %p96 = scmp.ne.s32.totalorder %s87, %s88
      %p97 = scmp.eq.s32.totalorder %s21, 0
      %p98 = por %p96, %p97
      %p99 = scmp.ne.s32.totalorder %s87, %s88
      %p100 = scmp.eq.s32.totalorder %s22, 1
      %p101 = por %p99, %p100
      %p103 = scmp.ne.s32.totalorder %s88, %s102
      %p104 = scmp.eq.s32.totalorder %s22, 0
      %p105 = por %p103, %p104
      %s107 = sadd.s32 %s106, 1
      %p110 = scmp.eq.s32.totalorder %s16, 1
      %p111 = scmp.ne.s32.totalorder %s106, %s108
      %p112 = scmp.eq.s32.totalorder %s16, 0
      %p113 = por %p111, %p112
      %p114 = scmp.ne.s32.totalorder %s106, %s108
      %p115 = scmp.eq.s32.totalorder %s21, 1
      %p116 = por %p114, %p115
      %p117 = scmp.ne.s32.totalorder %s108, %s109
      %p118 = scmp.eq.s32.totalorder %s21, 0
      %p119 = por %p117, %p118
      %p120 = scmp.ne.s32.totalorder %s108, %s109
      %p121 = scmp.eq.s32.totalorder %s22, 1
      %p122 = por %p120, %p121
      %p124 = scmp.ne.s32.totalorder %s109, %s123
      %p125 = scmp.eq.s32.totalorder %s22, 0
      %p126 = por %p124, %p125
      %s128 = sadd.s32 %s127, 1
      %p131 = scmp.eq.s32.totalorder %s16, 1
      %p132 = scmp.ne.s32.totalorder %s127, %s129
      %p133 = scmp.eq.s32.totalorder %s16, 0
      %p134 = por %p132, %p133
      %p135 = scmp.ne.s32.totalorder %s127, %s129
      %p136 = scmp.eq.s32.totalorder %s21, 1
      %p137 = por %p135, %p136
      %p138 = scmp.ne.s32.totalorder %s129, %s130
      %p139 = scmp.eq.s32.totalorder %s21, 0
      %p140 = por %p138, %p139
      %p141 = scmp.ne.s32.totalorder %s129, %s130
      %p142 = scmp.eq.s32.totalorder %s22, 1
      %p143 = por %p141, %p142
      %p145 = scmp.ne.s32.totalorder %s130, %s144
      %p146 = scmp.eq.s32.totalorder %s22, 0
      %p147 = por %p145, %p146
      %s149 = sadd.s32 %s148, 1
      %p152 = scmp.eq.s32.totalorder %s16, 1
      %p153 = scmp.ne.s32.totalorder %s148, %s150
      %p154 = scmp.eq.s32.totalorder %s16, 0
      %p155 = por %p153, %p154
      %p156 = scmp.ne.s32.totalorder %s148, %s150
      %p157 = scmp.eq.s32.totalorder %s21, 1
      %p158 = por %p156, %p157
      %p159 = scmp.ne.s32.totalorder %s150, %s151
      %p160 = scmp.eq.s32.totalorder %s21, 0
      %p161 = por %p159, %p160
      %p162 = scmp.ne.s32.totalorder %s150, %s151
      %p163 = scmp.eq.s32.totalorder %s22, 1
      %p164 = por %p162, %p163
      %p166 = scmp.ne.s32.totalorder %s151, %s165
      %p167 = scmp.eq.s32.totalorder %s22, 0
      %p168 = por %p166, %p167
      %s170 = sadd.s32 %s169, 1
      %p173 = scmp.eq.s32.totalorder %s16, 1
      %p174 = scmp.ne.s32.totalorder %s169, %s171
      %p175 = scmp.eq.s32.totalorder %s16, 0
      %p176 = por %p174, %p175
      %p177 = scmp.ne.s32.totalorder %s169, %s171
      %p178 = scmp.eq.s32.totalorder %s21, 1
      %p179 = por %p177, %p178
      %p180 = scmp.ne.s32.totalorder %s171, %s172
      %p181 = scmp.eq.s32.totalorder %s21, 0
      %p182 = por %p180, %p181
      %p183 = scmp.ne.s32.totalorder %s171, %s172
      %p184 = scmp.eq.s32.totalorder %s22, 1
      %p185 = por %p183, %p184
      %p187 = scmp.ne.s32.totalorder %s172, %s186
      %p188 = scmp.eq.s32.totalorder %s22, 0
      %p189 = por %p187, %p188
      %s190 = ssub.s32 %s23, %s35
      %s191 = ssub.s32 %s24, %s31
      %s192 = sor.u32 %s190, %s191
      %p193 = scmp.eq.s32.totalorder %s192, 0
      %s195 = sadd.s32 %s194, 1
      %s196 = scalar_select %p193, %s194, %s195
      %p199 = pneg %p193
      %p200 = scmp.eq.s32.totalorder %s16, 1
      %p201 = por %p199, %p200
      %p202 = scmp.ne.s32.totalorder %s194, %s197
      %p203 = scmp.eq.s32.totalorder %s16, 0
      %p204 = por %p202, %p203
      %p205 = scmp.ne.s32.totalorder %s194, %s197
      %p206 = scmp.eq.s32.totalorder %s21, 1
      %p207 = por %p205, %p206
      %p208 = scmp.ne.s32.totalorder %s197, %s198
      %p209 = scmp.eq.s32.totalorder %s21, 0
      %p210 = por %p208, %p209
      %p211 = scmp.ne.s32.totalorder %s197, %s198
      %p212 = scmp.eq.s32.totalorder %s22, 1
      %p213 = por %p211, %p212
      %p215 = scmp.ne.s32.totalorder %s198, %s214
      %p216 = scmp.eq.s32.totalorder %s22, 0
      %p217 = por %p215, %p216
      %p218 = scmp.le.s32.totalorder 1, %s16
      %p219 = scmp.lt.s32.totalorder %s16, 3
      %p220 = pnand %p218, %p219
      %p221 = pneg %p220
      // Predicated region
      $region9: #{tpu_custom_call.1} parent=5 // pred_check
        _
      $region10: #{tpu_custom_call.1} parent=5 // pred_check_branch
        %223 = sbr.rel (%p220) target = $region12
      $region11: #{tpu_custom_call.1} parent=5 // pred_region
        %s224 = ssub.s32 %s16, 1
        // Predicated region
        $region13: #{tpu_custom_call.1} parent=11 // pred_check
          %p225 = pneg %p77
        $region14: #{tpu_custom_call.1} parent=11 // pred_check_branch
          %227 = sbr.rel (%p225) target = $region16
        $region15: #{tpu_custom_call.1} parent=11 // pred_region
          _
        $region16: #{tpu_custom_call.1} parent=11 // pred_fallthru
          _
        // Predicated region
        $region17: #{tpu_custom_call.1} parent=11 // pred_check
          %p228 = pneg %p98
        $region18: #{tpu_custom_call.1} parent=11 // pred_check_branch
          %230 = sbr.rel (%p228) target = $region20
        $region19: #{tpu_custom_call.1} parent=11 // pred_region
          _
        $region20: #{tpu_custom_call.1} parent=11 // pred_fallthru
          _
        // Predicated region
        $region21: #{tpu_custom_call.1} parent=11 // pred_check
          %p231 = pneg %p119
        $region22: #{tpu_custom_call.1} parent=11 // pred_check_branch
          %233 = sbr.rel (%p231) target = $region24
        $region23: #{tpu_custom_call.1} parent=11 // pred_region
          _
        $region24: #{tpu_custom_call.1} parent=11 // pred_fallthru
          _
        // Predicated region
        $region25: #{tpu_custom_call.1} parent=11 // pred_check
          %p234 = pneg %p140
        $region26: #{tpu_custom_call.1} parent=11 // pred_check_branch
          %236 = sbr.rel (%p234) target = $region28
        $region27: #{tpu_custom_call.1} parent=11 // pred_region
          _
        $region28: #{tpu_custom_call.1} parent=11 // pred_fallthru
          _
        // Predicated region
        $region29: #{tpu_custom_call.1} parent=11 // pred_check
          %p237 = pneg %p161
        $region30: #{tpu_custom_call.1} parent=11 // pred_check_branch
          %239 = sbr.rel (%p237) target = $region32
        $region31: #{tpu_custom_call.1} parent=11 // pred_region
          _
        $region32: #{tpu_custom_call.1} parent=11 // pred_fallthru
          _
        // Predicated region
        $region33: #{tpu_custom_call.1} parent=11 // pred_check
          %p240 = pneg %p182
        $region34: #{tpu_custom_call.1} parent=11 // pred_check_branch
          %242 = sbr.rel (%p240) target = $region36
        $region35: #{tpu_custom_call.1} parent=11 // pred_region
          _
        $region36: #{tpu_custom_call.1} parent=11 // pred_fallthru
          _
      $region12: #{tpu_custom_call.1} parent=5 // pred_fallthru
        _
      %p243 = scmp.lt.s32.totalorder %s16, 2
      // Predicated region
      $region37: #{tpu_custom_call.1} parent=5 // pred_check
        %p244 = pneg %p243
      $region38: #{tpu_custom_call.1} parent=5 // pred_check_branch
        %246 = sbr.rel (%p244) target = $region40
      $region39: #{tpu_custom_call.1} parent=5 // pred_region
        // Predicated region
        $region41: #{tpu_custom_call.1} parent=39 // pred_check
          %p247 = pneg %p50
        $region42: #{tpu_custom_call.1} parent=39 // pred_check_branch
          %249 = sbr.rel (%p247) target = $region44
        $region43: #{tpu_custom_call.1} parent=39 // pred_region
          %s250 = smul.u32 2, %s24
          %p251 = scmp.lt.s32.totalorder %s23, 1
          %s252 = scalar_select %p251, %s23, 1
          %p253 = scmp.lt.s32.totalorder %s250, 1
          %s254 = scalar_select %p253, %s250, 1
          %s255 = smul.addr %s252, 2
          %s256 = sadd.s32 %s254, %s255
          %s257 = smul.addr %s256, 4
          %s258 = scalar_lea.vmem %s0, %s257
          %s259 = smul.u32 2, %s24
        $region44: #{tpu_custom_call.1} parent=39 // pred_fallthru
          _
      $region40: #{tpu_custom_call.1} parent=5 // pred_fallthru
        _
      %p260 = scmp.le.s32.totalorder 1, %s16
      %p261 = scmp.lt.s32.totalorder %s16, 3
      %p262 = pnand %p260, %p261
      %p263 = pneg %p262
      // Predicated region
      $region45: #{tpu_custom_call.1} parent=5 // pred_check
        _
      $region46: #{tpu_custom_call.1} parent=5 // pred_check_branch
        %265 = sbr.rel (%p262) target = $region48
      $region47: #{tpu_custom_call.1} parent=5 // pred_region
        %s266 = ssub.s32 %s16, 1
        %s267 = smul.u32 2, %s26
        %p268 = scmp.lt.s32.totalorder %s25, 1
        %s269 = scalar_select %p268, %s25, 1
        %p270 = scmp.lt.s32.totalorder %s267, 1
        %s271 = scalar_select %p270, %s267, 1
        %s272 = smul.addr %s269, 2
        %s273 = sadd.s32 %s271, %s272
        %s274 = smul.addr %s273, 4
        %s275 = scalar_lea.vmem %s0, %s274
        %p276 = pneg %p56
        %p277 = pneg %p53
        %p278 = pneg %p77
        %p279 = pneg %p74
        %p280 = pneg %p98
        %p281 = pneg %p95
        %p282 = pneg %p119
        %p283 = pneg %p116
        %p284 = pneg %p140
        %p285 = pneg %p137
        %p286 = pneg %p161
        %p287 = pneg %p158
        %p288 = pneg %p182
        %p289 = pneg %p179
        %p290 = pneg %p210
        %p291 = pneg %p207
        %s292 = sand.u32 %s197, 1
        %s293 = scalar_lea.sflag [#allocation3], %s292
        %s294 = sand.u32 %s197, 1
        %s295 = smul.addr %s294, 8
        %s296 = scalar_lea.vmem [#allocation2], %s295
        %s297 = smul.u32 2, %s26
        %p298 = scmp.lt.s32.totalorder %s25, 1
        %s299 = scalar_select %p298, %s25, 1
        %p300 = scmp.lt.s32.totalorder %s297, 1
        %s301 = scalar_select %p300, %s297, 1
        %s302 = smul.addr %s299, 2
        %s303 = sadd.s32 %s301, %s302
        %s304 = smul.addr %s303, 4
        %s305 = scalar_lea.vmem %s0, %s304
        %s306 = smul.u32 2, %s26
        %s307 = smul.u32 2, %s26
        %v309 = vld [vmem:[%s305] sm:$0xff]
        %v311 = vcombine.high %v309, %v309
        %v313 = vpack.c.bf16 %v309, %v309
        %v314 = vpack.c.bf16 %v311, %v311
        %v315 = vld [vmem:[%s1] sm:$0xf]
        %v316 = vld [vmem:[%s1 + $0x4] sm:$0xf]
        %v317 = vld [vmem:[%s1 + $0x8] sm:$0xf]
        %v318 = vld [vmem:[%s1 + $0xc] sm:$0xf]
        %v319 = vld [vmem:[%s2] sm:$0xff]
        %v320 = vld [vmem:[%s2 + $0x8] sm:$0xff]
        %v321 = vld [vmem:[%s2 + $0x10] sm:$0xff]
        %v322 = vld [vmem:[%s2 + $0x18] sm:$0xff]
        %324 = vset.pattern.permute.xlu0 0
        %325 = vperm.xlu0 %324, %v319
        %v326 = vpop.permute.xlu0 %325
        %329 = vset.pattern.permute.xlu0 0
        %330 = vperm.xlu0 %329, %v320
        %v331 = vpop.permute.xlu0 %330
        %334 = vset.pattern.permute.xlu0 0
        %335 = vperm.xlu0 %334, %v321
        %v336 = vpop.permute.xlu0 %335
        %339 = vset.pattern.permute.xlu0 0
        %340 = vperm.xlu0 %339, %v322
        %v341 = vpop.permute.xlu0 %340
        %v347 = vunpack.c.l.b16 %v315
        %v348 = vunpack.c.l.b16 %v316
        %v349 = vunpack.c.l.b16 %v317
        %v350 = vunpack.c.l.b16 %v318
        %v351 = vpack.c.b16 %v348, %v347
        %v352 = vpack.c.b16 %v350, %v349
        %vm353 = vcmask 31744
        %v355 = vsel %vm353, %v351, 0
        %v358 = vsel %vm353, %v352, 0
        %vm360 = vcmask 1041408
        %v362 = vsel %vm360, %v313, 0
        %v365 = vsel %vm360, %v314, 0
        %367 = vmatprep.subr.bf16.mxu0 0
        %368 = vmatpush1.bf16.msra.mxu0 0
        %369 = vmatprep.subr.bf16.mxu0 0
        %370 = vmatpush1.bf16.msra.mxu0 0
        %371 = vmatprep.subr.bf16.mxu0 0
        %372 = vmatpush1.bf16.msra.mxu0 0
        %373 = vmatprep.subr.bf16.mxu0 0
        %374 = vmatpush1.bf16.msra.mxu0 0
        %375 = vmatprep.subr.bf16.mxu0 0
        %376 = vmatpush1.bf16.msra.mxu0 0
        %377 = vmatprep.subr.bf16.mxu0 0
        %378 = vmatpush1.bf16.msra.mxu0 0
        %379 = vmatprep.subr.bf16.mxu0 0
        %380 = vmatpush1.bf16.msra.mxu0 0
        %381 = vmatprep.subr.bf16.mxu0 %v365
        %382 = vmatpush1.bf16.msra.mxu0 %v362
        %383 = vmatprep.subr.bf16.mxu0 0
        %384 = vmatpush2.bf16.msra.mxu0 0
        %385 = vmatprep.subr.bf16.mxu0 0
        %386 = vmatpush2.bf16.msra.mxu0 0
        %387 = vmatprep.subr.bf16.mxu0 0
        %388 = vmatpush2.bf16.msra.mxu0 0
        %389 = vmatprep.subr.bf16.mxu0 0
        %390 = vmatpush2.bf16.msra.mxu0 0
        %391 = vmatprep.subr.bf16.mxu0 0
        %392 = vmatpush2.bf16.msra.mxu0 0
        %393 = vmatprep.subr.bf16.mxu0 0
        %394 = vmatpush2.bf16.msra.mxu0 0
        %395 = vmatprep.subr.bf16.mxu0 0
        %396 = vmatpush2.bf16.msra.mxu0 0
        %397 = vmatprep.subr.bf16.mxu0 0
        %398 = vmatpush2.bf16.msra.mxu0 0
        %399 = vmatprep.mubr.bf16.mxu0 0
        %400 = vmatmul.mubr.bf16.gmra.mxu0 %v355
        %v401 = vpop.f32.mrf.mxu0
        %v402 = vadd.f32 %v326, %v401
        %v403 = vpop.f32.mrf.mxu0
        %v404 = vadd.f32 %v326, %v403
        %v405 = vpop.f32.mrf.mxu0
        %v406 = vadd.f32 %v331, %v405
        %v407 = vpop.f32.mrf.mxu0
        %v408 = vadd.f32 %v331, %v407
        %409 = vmatprep.mubr.bf16.mxu0 0
        %410 = vmatmul.mubr.bf16.gmra.mxu0 %v358
        %v411 = vpop.f32.mrf.mxu0
        %v412 = vadd.f32 %v336, %v411
        %v413 = vpop.f32.mrf.mxu0
        %v414 = vadd.f32 %v336, %v413
        %v415 = vpop.f32.mrf.mxu0
        %v416 = vadd.f32 %v341, %v415
        %v417 = vpop.f32.mrf.mxu0
        %v418 = vadd.f32 %v341, %v417
        %419 = vdwg.mxu0
        %v420 = vmax.f32 %v402, 0.0
        %v421 = vmax.f32 %v404, 0.0
        %v422 = vmax.f32 %v406, 0.0
        %v423 = vmax.f32 %v408, 0.0
        %v424 = vmax.f32 %v412, 0.0
        %v425 = vmax.f32 %v414, 0.0
        %v426 = vmax.f32 %v416, 0.0
        %v427 = vmax.f32 %v418, 0.0
        %v428 = vpack.c.bf16 %v422, %v420
        %v429 = vpack.c.bf16 %v423, %v421
        %v430 = vpack.c.bf16 %v426, %v424
        %v431 = vpack.c.bf16 %v427, %v425
        %v432 = vld [vmem:[%s3] sm:$0xf]
        %v433 = vld [vmem:[%s3 + $0x4] sm:$0xf]
        %v434 = vld [vmem:[%s3 + $0x8] sm:$0xf]
        %v435 = vld [vmem:[%s3 + $0xc] sm:$0xf]
        %v436 = vld [vmem:[%s4] sm:$0xff]
        %v437 = vld [vmem:[%s4 + $0x8] sm:$0xff]
        %v438 = vld [vmem:[%s4 + $0x10] sm:$0xff]
        %v439 = vld [vmem:[%s4 + $0x18] sm:$0xff]
        %441 = vset.pattern.permute.xlu0 0
        %442 = vperm.xlu0 %441, %v436
        %v443 = vpop.permute.xlu0 %442
        %446 = vset.pattern.permute.xlu0 0
        %447 = vperm.xlu0 %446, %v437
        %v448 = vpop.permute.xlu0 %447
        %451 = vset.pattern.permute.xlu0 0
        %452 = vperm.xlu0 %451, %v438
        %v453 = vpop.permute.xlu0 %452
        %456 = vset.pattern.permute.xlu0 0
        %457 = vperm.xlu0 %456, %v439
        %v458 = vpop.permute.xlu0 %457
        %v464 = vunpack.c.l.b16 %v432
        %v465 = vunpack.c.l.b16 %v433
        %v466 = vunpack.c.l.b16 %v434
        %v467 = vunpack.c.l.b16 %v435
        %v468 = vpack.c.b16 %v465, %v464
        %v469 = vpack.c.b16 %v467, %v466
        %vm470 = vcmask 261120
        %v472 = vsel %vm470, %v468, 0
        %v475 = vsel %vm470, %v469, 0
        %477 = vmatprep.subr.bf16.mxu0 0
        %478 = vmatpush1.bf16.msra.mxu0 0
        %479 = vmatprep.subr.bf16.mxu0 0
        %480 = vmatpush1.bf16.msra.mxu0 0
        %481 = vmatprep.subr.bf16.mxu0 0
        %482 = vmatpush1.bf16.msra.mxu0 0
        %483 = vmatprep.subr.bf16.mxu0 0
        %484 = vmatpush1.bf16.msra.mxu0 0
        %485 = vmatprep.subr.bf16.mxu0 0
        %486 = vmatpush1.bf16.msra.mxu0 0
        %487 = vmatprep.subr.bf16.mxu0 0
        %488 = vmatpush1.bf16.msra.mxu0 0
        %489 = vmatprep.subr.bf16.mxu0 %v431
        %490 = vmatpush1.bf16.msra.mxu0 %v430
        %491 = vmatprep.subr.bf16.mxu0 %v429
        %492 = vmatpush1.bf16.msra.mxu0 %v428
        %493 = vmatprep.subr.bf16.mxu0 0
        %494 = vmatpush2.bf16.msra.mxu0 0
        %495 = vmatprep.subr.bf16.mxu0 0
        %496 = vmatpush2.bf16.msra.mxu0 0
        %497 = vmatprep.subr.bf16.mxu0 0
        %498 = vmatpush2.bf16.msra.mxu0 0
        %499 = vmatprep.subr.bf16.mxu0 0
        %500 = vmatpush2.bf16.msra.mxu0 0
        %501 = vmatprep.subr.bf16.mxu0 0
        %502 = vmatpush2.bf16.msra.mxu0 0
        %503 = vmatprep.subr.bf16.mxu0 0
        %504 = vmatpush2.bf16.msra.mxu0 0
        %505 = vmatprep.subr.bf16.mxu0 0
        %506 = vmatpush2.bf16.msra.mxu0 0
        %507 = vmatprep.subr.bf16.mxu0 0
        %508 = vmatpush2.bf16.msra.mxu0 0
        %509 = vmatprep.mubr.bf16.mxu0 0
        %510 = vmatmul.mubr.bf16.gmra.mxu0 %v472
        %v511 = vpop.f32.mrf.mxu0
        %v512 = vadd.f32 %v443, %v511
        %v513 = vpop.f32.mrf.mxu0
        %v514 = vadd.f32 %v443, %v513
        %v515 = vpop.f32.mrf.mxu0
        %v516 = vadd.f32 %v448, %v515
        %v517 = vpop.f32.mrf.mxu0
        %v518 = vadd.f32 %v448, %v517
        %519 = vmatprep.mubr.bf16.mxu0 0
        %520 = vmatmul.mubr.bf16.gmra.mxu0 %v475
        %v521 = vpop.f32.mrf.mxu0
        %v522 = vadd.f32 %v453, %v521
        %v523 = vpop.f32.mrf.mxu0
        %v524 = vadd.f32 %v453, %v523
        %v525 = vpop.f32.mrf.mxu0
        %v526 = vadd.f32 %v458, %v525
        %v527 = vpop.f32.mrf.mxu0
        %v528 = vadd.f32 %v458, %v527
        %529 = vdwg.mxu0
        %v530 = vmax.f32 %v512, 0.0
        %v531 = vmax.f32 %v514, 0.0
        %v532 = vmax.f32 %v516, 0.0
        %v533 = vmax.f32 %v518, 0.0
        %v534 = vmax.f32 %v522, 0.0
        %v535 = vmax.f32 %v524, 0.0
        %v536 = vmax.f32 %v526, 0.0
        %v537 = vmax.f32 %v528, 0.0
        %v538 = vpack.c.bf16 %v532, %v530
        %v539 = vpack.c.bf16 %v533, %v531
        %v540 = vpack.c.bf16 %v536, %v534
        %v541 = vpack.c.bf16 %v537, %v535
        %v542 = vld [vmem:[%s5] sm:$0x3]
        %v543 = vld [vmem:[%s6] sm:$0xf]
        %545 = vset.pattern.permute.xlu0 0
        %546 = vperm.xlu0 %545, %v543
        %v547 = vpop.permute.xlu0 %546
        %v550 = vsel %vm470, %v542, 0
        %552 = vmatprep.subr.bf16.mxu0 0
        %553 = vmatpush1.bf16.msra.mxu0 0
        %554 = vmatprep.subr.bf16.mxu0 0
        %555 = vmatpush1.bf16.msra.mxu0 0
        %556 = vmatprep.subr.bf16.mxu0 0
        %557 = vmatpush1.bf16.msra.mxu0 0
        %558 = vmatprep.subr.bf16.mxu0 0
        %559 = vmatpush1.bf16.msra.mxu0 0
        %560 = vmatprep.subr.bf16.mxu0 0
        %561 = vmatpush1.bf16.msra.mxu0 0
        %562 = vmatprep.subr.bf16.mxu0 0
        %563 = vmatpush1.bf16.msra.mxu0 0
        %564 = vmatprep.subr.bf16.mxu0 %v541
        %565 = vmatpush1.bf16.msra.mxu0 %v540
        %566 = vmatprep.subr.bf16.mxu0 %v539
        %567 = vmatpush1.bf16.msra.mxu0 %v538
        %568 = vmatprep.subr.bf16.mxu0 0
        %569 = vmatpush2.bf16.msra.mxu0 0
        %570 = vmatprep.subr.bf16.mxu0 0
        %571 = vmatpush2.bf16.msra.mxu0 0
        %572 = vmatprep.subr.bf16.mxu0 0
        %573 = vmatpush2.bf16.msra.mxu0 0
        %574 = vmatprep.subr.bf16.mxu0 0
        %575 = vmatpush2.bf16.msra.mxu0 0
        %576 = vmatprep.subr.bf16.mxu0 0
        %577 = vmatpush2.bf16.msra.mxu0 0
        %578 = vmatprep.subr.bf16.mxu0 0
        %579 = vmatpush2.bf16.msra.mxu0 0
        %580 = vmatprep.subr.bf16.mxu0 0
        %581 = vmatpush2.bf16.msra.mxu0 0
        %582 = vmatprep.subr.bf16.mxu0 0
        %583 = vmatpush2.bf16.msra.mxu0 0
        %584 = vmatprep.mubr.bf16.mxu0 0
        %585 = vmatmul.mubr.bf16.gmra.mxu0 %v550
        %v586 = vpop.f32.mrf.mxu0
        %v587 = vadd.f32 %v547, %v586
        %v588 = vpop.f32.mrf.mxu0
        %v589 = vadd.f32 %v547, %v588
        %v590 = vpop.f32.mrf.mxu0
        %v591 = vpop.f32.mrf.mxu0
        %592 = vdwg.mxu0
        %v595 = vcombine.low %v587, %v589
        %597 = vst [vmem:[%s296] sm:$0xff] %v595
        %s598 = sand.u32 %s197, 1
        %s599 = scalar_lea.sflag [#allocation3], %s598
        %s600 = sand.u32 %s197, 1
        %s601 = smul.addr %s600, 8
        %s602 = scalar_lea.vmem [#allocation2], %s601
        // Predicated region
        $region49: #{tpu_custom_call.1} parent=47 // pred_check
          %p603 = pneg %p207
        $region50: #{tpu_custom_call.1} parent=47 // pred_check_branch
          %605 = sbr.rel (%p603) target = $region52
        $region51: #{tpu_custom_call.1} parent=47 // pred_region
          %s606 = smul.u32 2, %s26
          %s608 = ssub.s32 128, 128
          %609 = vsyncadd %s599, %s608
          %s610 = smul.addr %s25, 2
          %s611 = sadd.s32 %s606, %s610
          %s612 = smul.addr %s611, 64
          %s613 = scalar_lea.hbm %s7, %s612
          %s615 = sshll.u32 %s602, 4
          %s616 = int_to_ptr.vmem [resolvable:$true] %s615
          %618 = dma.vmem_to_hbm [thread:$0]  %s616, 128, %s613, %s599
        $region52: #{tpu_custom_call.1} parent=47 // pred_fallthru
          _
      $region48: #{tpu_custom_call.1} parent=5 // pred_fallthru
        _
      %p619 = scmp.le.s32.totalorder 2, %s16
      // Predicated region
      $region53: #{tpu_custom_call.1} parent=5 // pred_check
        %p620 = pneg %p619
      $region54: #{tpu_custom_call.1} parent=5 // pred_check_branch
        %622 = sbr.rel (%p620) target = $region56
      $region55: #{tpu_custom_call.1} parent=5 // pred_region
        %s623 = ssub.s32 %s16, 2
        // Predicated region
        $region57: #{tpu_custom_call.1} parent=55 // pred_check
          %p624 = pneg %p213
        $region58: #{tpu_custom_call.1} parent=55 // pred_check_branch
          %626 = sbr.rel (%p624) target = $region60
        $region59: #{tpu_custom_call.1} parent=55 // pred_region
          %s627 = sand.u32 %s198, 1
          %s628 = scalar_lea.sflag [#allocation3], %s627
          %s629 = sand.u32 %s198, 1
          %s630 = smul.addr %s629, 8
          %s631 = scalar_lea.vmem [#allocation2], %s630
          %632 = dma.done %s628, 128
        $region60: #{tpu_custom_call.1} parent=55 // pred_fallthru
          _
      $region56: #{tpu_custom_call.1} parent=5 // pred_fallthru
        _
    $region6: #{tpu_custom_call.1} parent=1 // loop_footer
      %s20 = sadd.s32 1, %s16
    $region7: #{tpu_custom_call.1} parent=1 // loop_footer_branch
      %15 = sbr.rel target = $region3
    $region8: #{tpu_custom_call.1} parent=1 // loop_exit
      _
    %633 = vsyncpa [#allocation3], 1
    %s634 = scalar_lea.sflag [#allocation3], 1
    %635 = vsyncpa %s634, 1

</llo_original>
